<compile_context>
chip_gen: v6e
topology: v6e:2x2x1
jax: 0.10.0
libtpu: 0.0.40
codegen_flags: <defaults>
</compile_context>

<pallas_src>
import functools

import jax
import jax.numpy as jnp
from jax.experimental import pallas as pl
from jax.experimental.pallas import tpu as pltpu

_EPSILON = 1e-05
# ~2 MiB per f32 input block => 2 inputs x 2 pipeline buffers ~= 8 MiB VMEM,
# comfortably inside the 32 MiB scoped limit on v5e/v6e/v7x while already
# close to the HBM roofline for this purely memory-bound reduction.
_TARGET_BLOCK_ELEMS = 512 * 1024


def _dice_partial_kernel(pre_ref, tar_ref, inter_ref, union_ref, *,
                         block_rows, lanes, valid_rows_last):
    p = pre_ref[...].astype(jnp.float32)
    t = tar_ref[...].astype(jnp.float32)
    prod = p * t          # intersection terms
    sm = p + t            # union terms

    if valid_rows_last != block_rows:
        # Static branch: grid does not divide rows evenly -> mask the garbage
        # rows of the ragged last block (select discards any NaN/Inf that may
        # live in the out-of-bounds region of the padded DMA tile).
        i = pl.program_id(0)
        limit = jnp.where(i == pl.num_programs(0) - 1, valid_rows_last,
                          block_rows)
        row = jax.lax.broadcasted_iota(jnp.int32, (block_rows, lanes), 0)
        keep = row < limit
        prod = jnp.where(keep, prod, 0.0)
        sm = jnp.where(keep, sm, 0.0)

    # Sublane-axis reduce only: cheap vreg adds, output stays lane-dense so the
    # writeback is a full-width unmasked store.
    inter_ref[...] = jnp.sum(prod, axis=0, keepdims=True).reshape(1, 1, lanes)
    union_ref[...] = jnp.sum(sm, axis=0, keepdims=True).reshape(1, 1, lanes)


@jax.jit
def dice_loss(predict, target):
    assert predict.shape == target.shape
    total = predict.size

    # Pick a lane width (multiple of 128) dividing the flattened size so the
    # reshape is a free bitcast and no padding is needed.
    lanes = None
    for cand in (512, 1024, 2048, 256, 128):
        if total % cand == 0:
            lanes = cand
            break

    pre = predict.reshape(-1)
    tar = target.reshape(-1)
    if lanes is None:
        # Fallback: tiny zero-pad (< 512 elements; zeros contribute nothing to
        # intersection or union) so the lane-dense 2D view exists.
        lanes = 512
        pad = (-total) % lanes
        pre = jnp.pad(pre, (0, pad))
        tar = jnp.pad(tar, (0, pad))

    rows = pre.size // lanes
    pre = pre.reshape(rows, lanes)
    tar = tar.reshape(rows, lanes)

    # Block rows: multi-MB blocks, multiple of 8, clamped to the full extent.
    target_rows = max(8, (_TARGET_BLOCK_ELEMS // lanes) // 8 * 8)
    block_rows = rows if rows <= target_rows else target_rows
    grid = pl.cdiv(rows, block_rows)
    valid_rows_last = rows - (grid - 1) * block_rows

    kernel = functools.partial(
        _dice_partial_kernel,
        block_rows=block_rows, lanes=lanes, valid_rows_last=valid_rows_last)

    inter_part, union_part = pl.pallas_call(
        kernel,
        out_shape=(
            jax.ShapeDtypeStruct((grid, 1, lanes), jnp.float32),
            jax.ShapeDtypeStruct((grid, 1, lanes), jnp.float32),
        ),
        grid_spec=pltpu.PrefetchScalarGridSpec(
            num_scalar_prefetch=0,
            grid=(grid,),
            in_specs=[
                pl.BlockSpec((block_rows, lanes), lambda i: (i, 0)),
                pl.BlockSpec((block_rows, lanes), lambda i: (i, 0)),
            ],
            out_specs=[
                pl.BlockSpec((1, 1, lanes), lambda i: (i, 0, 0)),
                pl.BlockSpec((1, 1, lanes), lambda i: (i, 0, 0)),
            ],
        ),
        compiler_params=pltpu.CompilerParams(
            dimension_semantics=("parallel",),  # independent blocks -> v7x 2-TC
            vmem_limit_bytes=32 * 1024 * 1024,
        ),
    )(pre, tar)

    # Trivial cross-block combine + scalar score, matching the PyTorch module:
    #   score = 1 - 2 * (intersection + eps) / (union + eps)
    intersection = jnp.sum(inter_part)
    union = jnp.sum(union_part)
    return 1.0 - 2.0 * (intersection + _EPSILON) / (union + _EPSILON)


if __name__ == "__main__":
    key = jax.random.PRNGKey(0)
    k1, k2 = jax.random.split(key)

    # Small NCHW shapes consistent with the module: batch=2, channels=4, 16x16.
    predict = jax.nn.sigmoid(jax.random.normal(k1, (2, 4, 16, 16), jnp.float32))
    target = (jax.random.uniform(k2, (2, 4, 16, 16)) > 0.5).astype(jnp.float32)

    score = jax.block_until_ready(dice_loss(predict, target))

    # Pure-JAX reference for correctness.
    num = predict.shape[0]
    pre_ref = predict.reshape(num, -1)
    tar_ref = target.reshape(num, -1)
    inter_ref = (pre_ref * tar_ref).sum(-1).sum()
    union_ref = (pre_ref + tar_ref).sum(-1).sum()
    ref = 1.0 - 2.0 * (inter_ref + _EPSILON) / (union_ref + _EPSILON)

    assert jnp.allclose(score, ref, atol=1e-5, rtol=1e-5), (score, ref)
    print("KERNEL_OK")
</pallas_src>

<mosaic_0001>
module attributes {stable_mosaic.version = 11 : i64} {
  func.func @_dice_partial_kernel(%arg0: i32, %arg1: memref<4x512xf32, #tpu.memory_space<vmem>>, %arg2: memref<4x512xf32, #tpu.memory_space<vmem>>, %arg3: memref<1x1x512xf32, #tpu.memory_space<vmem>>, %arg4: memref<1x1x512xf32, #tpu.memory_space<vmem>>) attributes {dimension_semantics = [#tpu.dimension_semantics<parallel>], iteration_bounds = array<i64: 1>, scalar_prefetch = 0 : i64, scratch_operands = 0 : i64, tpu.core_type = #tpu.core_type<tc>, window_params = [{transform_indices = @transform_0, window_bounds = array<i64: 4, 512>}, {transform_indices = @transform_1, window_bounds = array<i64: 4, 512>}, {transform_indices = @transform_2, window_bounds = array<i64: 1, 1, 512>}, {transform_indices = @transform_3, window_bounds = array<i64: 1, 1, 512>}]} {
    %c0 = arith.constant 0 : index
    %c0_0 = arith.constant 0 : index
    %0 = vector.load %arg1[%c0, %c0_0] : memref<4x512xf32, #tpu.memory_space<vmem>>, vector<4x512xf32>
    %c0_1 = arith.constant 0 : index
    %c0_2 = arith.constant 0 : index
    %1 = vector.load %arg2[%c0_1, %c0_2] : memref<4x512xf32, #tpu.memory_space<vmem>>, vector<4x512xf32>
    %2 = arith.mulf %0, %1 : vector<4x512xf32>
    %3 = arith.addf %0, %1 : vector<4x512xf32>
    %cst = arith.constant dense<0.000000e+00> : vector<512xf32>
    %4 = vector.multi_reduction <add>, %2, %cst [0] : vector<4x512xf32> to vector<512xf32>
    %5 = vector.shape_cast %4 : vector<512xf32> to vector<1x512xf32>
    %6 = vector.shape_cast %5 : vector<1x512xf32> to vector<1x1x512xf32>
    %c0_3 = arith.constant 0 : index
    %c0_4 = arith.constant 0 : index
    %c0_5 = arith.constant 0 : index
    %7 = vector.load %arg3[%c0_3, %c0_4, %c0_5] : memref<1x1x512xf32, #tpu.memory_space<vmem>>, vector<1x1x512xf32>
    tpu.vector_store %arg3[%c0_3, %c0_4, %c0_5], %6 {strides = array<i32>} : memref<1x1x512xf32, #tpu.memory_space<vmem>>, vector<1x1x512xf32>,
    %cst_6 = arith.constant dense<0.000000e+00> : vector<512xf32>
    %8 = vector.multi_reduction <add>, %3, %cst_6 [0] : vector<4x512xf32> to vector<512xf32>
    %9 = vector.shape_cast %8 : vector<512xf32> to vector<1x512xf32>
    %10 = vector.shape_cast %9 : vector<1x512xf32> to vector<1x1x512xf32>
    %c0_7 = arith.constant 0 : index
    %c0_8 = arith.constant 0 : index
    %c0_9 = arith.constant 0 : index
    %11 = vector.load %arg4[%c0_7, %c0_8, %c0_9] : memref<1x1x512xf32, #tpu.memory_space<vmem>>, vector<1x1x512xf32>
    tpu.vector_store %arg4[%c0_7, %c0_8, %c0_9], %10 {strides = array<i32>} : memref<1x1x512xf32, #tpu.memory_space<vmem>>, vector<1x1x512xf32>,
    return
  }
  func.func @transform_0(%arg0: i32) -> (i32, i32) {
    %c0_i32 = arith.constant 0 : i32
    %c0_i32_0 = arith.constant 0 : i32
    return %arg0, %c0_i32 : i32, i32
  }
  func.func @transform_1(%arg0: i32) -> (i32, i32) {
    %c0_i32 = arith.constant 0 : i32
    %c0_i32_0 = arith.constant 0 : i32
    return %arg0, %c0_i32 : i32, i32
  }
  func.func @transform_2(%arg0: i32) -> (i32, i32, i32) {
    %c0_i32 = arith.constant 0 : i32
    %c0_i32_0 = arith.constant 0 : i32
    %c0_i32_1 = arith.constant 0 : i32
    return %arg0, %c0_i32, %c0_i32_0 : i32, i32, i32
  }
  func.func @transform_3(%arg0: i32) -> (i32, i32, i32) {
    %c0_i32 = arith.constant 0 : i32
    %c0_i32_0 = arith.constant 0 : i32
    %c0_i32_1 = arith.constant 0 : i32
    return %arg0, %c0_i32, %c0_i32_0 : i32, i32, i32
  }
}

</mosaic_0001>

<llo_original>
// kernel: dice_loss.1
$region0: #{dice_loss.1}
  #allocation0 [shape = 'u32[]', space=smem, size = 0x4, offset = 0x4, fixed_abs, tag = 'smem constant byte address 0x4 - core index']
  #allocation1 [shape = 'u32[144,128]{1,0:T(1,128)}', space=vmem, size = 0x12000, scoped, tag = 'internal scratch']
  %s0 = inlined_call_operand.vmem [shape: f32[4,512], index: 0, kind: input, shape index: {}]
  %s1 = inlined_call_operand.vmem [shape: f32[4,512], index: 1, kind: input, shape index: {}]
  %s2 = inlined_call_operand.vmem [shape: f32[1,1,512], index: 2, kind: output, shape index: {0}]
  %s3 = inlined_call_operand.vmem [shape: f32[1,1,512], index: 3, kind: output, shape index: {1}]
  %4 = xla_tuple %s2, %s3
  %s5 = sld [smem:[#allocation0]]
  $region26: #{dice_loss.1} parent=0
    _
  %s7 = ssub.s32 1, %s5
  %s8 = scalar_select 0, %s7, %s5
  // Predicated region
  $region2: #{dice_loss.1} parent=0 // pred_check
    _
  $region3: #{dice_loss.1} parent=0 // pred_check_branch
    %10 = sbr.rel (0) target = $region5
  $region4: #{dice_loss.1} parent=0 // pred_region
    _
  $region5: #{dice_loss.1} parent=0 // pred_fallthru
    _
  // Predicated region
  $region6: #{dice_loss.1} parent=0 // pred_check
    _
  $region7: #{dice_loss.1} parent=0 // pred_check_branch
    %12 = sbr.rel (0) target = $region9
  $region8: #{dice_loss.1} parent=0 // pred_region
    _
  $region9: #{dice_loss.1} parent=0 // pred_fallthru
    _
  %v13 = vld [vmem:[%s0] sm:$0xff]
  %v14 = vld [vmem:[%s0 + $0x8] sm:$0xff]
  %v15 = vld [vmem:[%s1] sm:$0xff]
  %v16 = vld [vmem:[%s1 + $0x8] sm:$0xff]
  %v17 = vmul.f32 %v13, %v15
  %v18 = vmul.f32 %v14, %v16
  %v19 = vadd.f32 %v13, %v15
  %v20 = vadd.f32 %v14, %v16
  %v23 = vcombine.high %v17, %v17
  %v24 = vcombine.high %v18, %v18
  %vm27 = vcmask 1043456
  %v28 = vsel %vm27, %v17, 0.0
  %v29 = vrot.slane %v28, 4
  %v30 = vadd.f32 %v28, %v29
  %v31 = vrot.slane %v30, 2
  %v32 = vadd.f32 %v30, %v31
  %v33 = vrot.slane %v32, 1
  %v34 = vadd.f32 %v32, %v33
  %v35 = vsel %vm27, %v23, 0.0
  %v36 = vrot.slane %v35, 4
  %v37 = vadd.f32 %v35, %v36
  %v38 = vrot.slane %v37, 2
  %v39 = vadd.f32 %v37, %v38
  %v40 = vrot.slane %v39, 1
  %v41 = vadd.f32 %v39, %v40
  %v42 = vsel %vm27, %v18, 0.0
  %v43 = vrot.slane %v42, 4
  %v44 = vadd.f32 %v42, %v43
  %v45 = vrot.slane %v44, 2
  %v46 = vadd.f32 %v44, %v45
  %v47 = vrot.slane %v46, 1
  %v48 = vadd.f32 %v46, %v47
  %v49 = vsel %vm27, %v24, 0.0
  %v50 = vrot.slane %v49, 4
  %v51 = vadd.f32 %v49, %v50
  %v52 = vrot.slane %v51, 2
  %v53 = vadd.f32 %v51, %v52
  %v54 = vrot.slane %v53, 1
  %v55 = vadd.f32 %v53, %v54
  %v60 = vcombine.low %v34, %v41
  %v61 = vcombine.low %v48, %v55
  %v63 = vunpack.c.l.s4 1966171168
  %v64 = vunpack.c.0.s8 %v63
  %v65 = vlaneseq
  %v66 = vshrl.u32 %v65, 7
  %v67 = vsub.s32 %v64, %v66
  %v68 = vrot.slane %v60, %v67
  %v70 = vunpack.c.l.s4 1966171168
  %v71 = vunpack.c.0.s8 %v70
  %v72 = vlaneseq
  %v73 = vshrl.u32 %v72, 7
  %v74 = vsub.s32 %v71, %v73
  %v75 = vrot.slane %v61, %v74
  %v76 = vcombine.low %v68, %v75
  %v78 = vunpack.c.l.s4 1966171168
  %v79 = vunpack.c.0.s8 %v78
  %v80 = vlaneseq
  %v81 = vshrl.u32 %v80, 7
  %v82 = vsub.s32 %v79, %v81
  %v83 = vrot.slane %v76, %v82
  %v85 = vlaneseq
  %vm86 = vcmp.ge.s32.totalorder %v85, 0
  %vm87 = vcmp.lt.s32.totalorder %v85, 512
  %vm88 = vmand %vm86, %vm87
  %89 = vst.msk [vmem:[%s2] sm:$0xf] %vm88, %v83
  %v92 = vcombine.high %v19, %v19
  %v93 = vcombine.high %v20, %v20
  %v96 = vsel %vm27, %v19, 0.0
  %v97 = vrot.slane %v96, 4
  %v98 = vadd.f32 %v96, %v97
  %v99 = vrot.slane %v98, 2
  %v100 = vadd.f32 %v98, %v99
  %v101 = vrot.slane %v100, 1
  %v102 = vadd.f32 %v100, %v101
  %v103 = vsel %vm27, %v92, 0.0
  %v104 = vrot.slane %v103, 4
  %v105 = vadd.f32 %v103, %v104
  %v106 = vrot.slane %v105, 2
  %v107 = vadd.f32 %v105, %v106
  %v108 = vrot.slane %v107, 1
  %v109 = vadd.f32 %v107, %v108
  %v110 = vsel %vm27, %v20, 0.0
  %v111 = vrot.slane %v110, 4
  %v112 = vadd.f32 %v110, %v111
  %v113 = vrot.slane %v112, 2
  %v114 = vadd.f32 %v112, %v113
  %v115 = vrot.slane %v114, 1
  %v116 = vadd.f32 %v114, %v115
  %v117 = vsel %vm27, %v93, 0.0
  %v118 = vrot.slane %v117, 4
  %v119 = vadd.f32 %v117, %v118
  %v120 = vrot.slane %v119, 2
  %v121 = vadd.f32 %v119, %v120
  %v122 = vrot.slane %v121, 1
  %v123 = vadd.f32 %v121, %v122
  %v128 = vcombine.low %v102, %v109
  %v129 = vcombine.low %v116, %v123
  %v131 = vunpack.c.l.s4 1966171168
  %v132 = vunpack.c.0.s8 %v131
  %v133 = vlaneseq
  %v134 = vshrl.u32 %v133, 7
  %v135 = vsub.s32 %v132, %v134
  %v136 = vrot.slane %v128, %v135
  %v138 = vunpack.c.l.s4 1966171168
  %v139 = vunpack.c.0.s8 %v138
  %v140 = vlaneseq
  %v141 = vshrl.u32 %v140, 7
  %v142 = vsub.s32 %v139, %v141
  %v143 = vrot.slane %v129, %v142
  %v144 = vcombine.low %v136, %v143
  %v146 = vunpack.c.l.s4 1966171168
  %v147 = vunpack.c.0.s8 %v146
  %v148 = vlaneseq
  %v149 = vshrl.u32 %v148, 7
  %v150 = vsub.s32 %v147, %v149
  %v151 = vrot.slane %v144, %v150
  %153 = vst.msk [vmem:[%s3] sm:$0xf] %vm88, %v151
  // Predicated region
  $region10: #{dice_loss.1} parent=0 // pred_check
    _
  $region11: #{dice_loss.1} parent=0 // pred_check_branch
    %155 = sbr.rel (0) target = $region13
  $region12: #{dice_loss.1} parent=0 // pred_region
    _
  $region13: #{dice_loss.1} parent=0 // pred_fallthru
    _
  // Predicated region
  $region14: #{dice_loss.1} parent=0 // pred_check
    _
  $region15: #{dice_loss.1} parent=0 // pred_check_branch
    %157 = sbr.rel (0) target = $region17
  $region16: #{dice_loss.1} parent=0 // pred_region
    _
  $region17: #{dice_loss.1} parent=0 // pred_fallthru
    _
  // Predicated region
  $region18: #{dice_loss.1} parent=0 // pred_check
    _
  $region19: #{dice_loss.1} parent=0 // pred_check_branch
    %159 = sbr.rel (0) target = $region21
  $region20: #{dice_loss.1} parent=0 // pred_region
    _
  $region21: #{dice_loss.1} parent=0 // pred_fallthru
    _
  // Predicated region
  $region22: #{dice_loss.1} parent=0 // pred_check
    _
  $region23: #{dice_loss.1} parent=0 // pred_check_branch
    %161 = sbr.rel (0) target = $region25
  $region24: #{dice_loss.1} parent=0 // pred_region
    _
  $region25: #{dice_loss.1} parent=0 // pred_fallthru
    _

</llo_original>
